<compile_context>
chip_gen: v6e
topology: v6e:2x2x1
jax: 0.10.0
libtpu: 0.0.40
codegen_flags: <defaults>
</compile_context>

<pallas_src>
import jax
import jax.numpy as jnp
import numpy as np
from jax.experimental import pallas as pl
from jax.experimental.pallas import tpu as pltpu

BN_EPS = 1e-5


def _make_kernel(batch, obs_dim, num_actions, hidden_dim):
    def kernel(obs_ref, act_ref,
               w1o_ref, w1a_eff_ref, b1_ref, g1_ref, be1_ref,
               w2_ref, b2_ref, g2_ref, be2_ref,
               w3_ref, b3_ref,
               wh_ref, bh_ref,
               out_ref):
        f32 = jnp.float32
        inv_b = jnp.float32(1.0 / batch)

        obs = obs_ref[...]                                        # [B, obs_dim]  f32
        act = act_ref[...]                                        # [B, 1]        i32

        # One-hot over actions, matmul'ed straight into the (embedding-folded)
        # fc1 action weights: one_hot @ (emb @ w1_act)  ==  emb[act] @ w1_act.
        iota = jax.lax.broadcasted_iota(jnp.int32, (batch, num_actions), 1)
        one_hot = (iota == act).astype(f32)                       # [B, num_actions]

        # fc1 on concat([obs, emb(act)]) as a split matmul (no lane concat).
        h = (jnp.dot(obs, w1o_ref[...], preferred_element_type=f32)
             + jnp.dot(one_hot, w1a_eff_ref[...], preferred_element_type=f32)
             + b1_ref[...])

        # BatchNorm1d (training mode, biased batch stats) + ReLU — single-pass stats.
        m = jnp.sum(h, axis=0, keepdims=True) * inv_b
        ex2 = jnp.sum(h * h, axis=0, keepdims=True) * inv_b
        v = jnp.maximum(ex2 - m * m, 0.0)
        h = (h - m) * jax.lax.rsqrt(v + BN_EPS) * g1_ref[...] + be1_ref[...]
        h = jnp.maximum(h, 0.0)

        # fc2 + BN2 + ReLU
        h = jnp.dot(h, w2_ref[...], preferred_element_type=f32) + b2_ref[...]
        m = jnp.sum(h, axis=0, keepdims=True) * inv_b
        ex2 = jnp.sum(h * h, axis=0, keepdims=True) * inv_b
        v = jnp.maximum(ex2 - m * m, 0.0)
        h = (h - m) * jax.lax.rsqrt(v + BN_EPS) * g2_ref[...] + be2_ref[...]
        h = jnp.maximum(h, 0.0)

        # fc3 + ReLU
        h = jnp.dot(h, w3_ref[...], preferred_element_type=f32) + b3_ref[...]
        h = jnp.maximum(h, 0.0)

        # Fused heads: one matmul produces [mu | log_var]; exp only the var half
        # via a lane mask, then a single full-width store.
        heads = jnp.dot(h, wh_ref[...], preferred_element_type=f32) + bh_ref[...]
        lane = jax.lax.broadcasted_iota(jnp.int32, heads.shape, 1)
        out_ref[...] = jnp.where(lane < obs_dim, heads, jnp.exp(heads))

    return kernel


def pedm_forward(x, kparams, *, obs_dim, num_actions, hidden_dim):
    """x: [B, obs_dim + 1] (last lane = discrete action index, float-encoded like PyTorch)."""
    batch = x.shape[0]
    # Split / cast OUTSIDE the kernel: the kernel receives a clean int32 action input
    # and a dense f32 observation block (no width-1 float lane slice in-kernel).
    obs = x[:, :obs_dim]
    act = x[:, obs_dim:obs_dim + 1].astype(jnp.int32)

    kernel = _make_kernel(batch, obs_dim, num_actions, hidden_dim)
    args = (obs, act,
            kparams["w1_obs"], kparams["w1_act_eff"], kparams["b1"],
            kparams["g1"], kparams["be1"],
            kparams["w2"], kparams["b2"], kparams["g2"], kparams["be2"],
            kparams["w3"], kparams["b3"],
            kparams["w_heads"], kparams["b_heads"])
    return pl.pallas_call(
        kernel,
        out_shape=jax.ShapeDtypeStruct((batch, 2 * obs_dim), jnp.float32),
        in_specs=[pl.BlockSpec(memory_space=pltpu.MemorySpace.VMEM)] * len(args),
        out_specs=pl.BlockSpec(memory_space=pltpu.MemorySpace.VMEM),
        compiler_params=pltpu.CompilerParams(vmem_limit_bytes=32 * 1024 * 1024),
    )(*args)


def init_params(key, obs_dim, num_actions, action_embed_dim, hidden_dim):
    """Deterministic synthetic init matching the PyTorch module's parameter shapes."""
    ks = jax.random.split(key, 6)
    in_dim = obs_dim + action_embed_dim

    def linear(k, fan_in, fan_out):
        kw, kb = jax.random.split(k)
        bound = 1.0 / np.sqrt(fan_in)
        w = jax.random.uniform(kw, (fan_in, fan_out), jnp.float32, -bound, bound)
        b = jax.random.uniform(kb, (1, fan_out), jnp.float32, -bound, bound)
        return w, b

    w1, b1 = linear(ks[0], in_dim, hidden_dim)
    w2, b2 = linear(ks[1], hidden_dim, hidden_dim)
    w3, b3 = linear(ks[2], hidden_dim, hidden_dim)
    w_mu, b_mu = linear(ks[3], hidden_dim, obs_dim)
    w_var, b_var = linear(ks[4], hidden_dim, obs_dim)
    emb = jax.random.normal(ks[5], (num_actions, action_embed_dim), jnp.float32)

    return dict(
        emb=emb, w1=w1, b1=b1,
        g1=jnp.ones((1, hidden_dim), jnp.float32), be1=jnp.zeros((1, hidden_dim), jnp.float32),
        w2=w2, b2=b2,
        g2=jnp.ones((1, hidden_dim), jnp.float32), be2=jnp.zeros((1, hidden_dim), jnp.float32),
        w3=w3, b3=b3,
        w_mu=w_mu, b_mu=b_mu, w_var=w_var, b_var=b_var,
    )


def prepare_kernel_params(params, *, obs_dim):
    """Fold the embedding table into fc1 and fuse the mu/var heads (wrapper-side, one-time)."""
    w1_obs = params["w1"][:obs_dim]                       # [obs_dim, hidden]
    w1_act = params["w1"][obs_dim:]                       # [embed_dim, hidden]
    w1_act_eff = params["emb"] @ w1_act                   # [num_actions, hidden]
    w_heads = jnp.concatenate([params["w_mu"], params["w_var"]], axis=1)   # [hidden, 2*obs]
    b_heads = jnp.concatenate([params["b_mu"], params["b_var"]], axis=1)   # [1, 2*obs]
    return dict(
        w1_obs=w1_obs, w1_act_eff=w1_act_eff, b1=params["b1"],
        g1=params["g1"], be1=params["be1"],
        w2=params["w2"], b2=params["b2"], g2=params["g2"], be2=params["be2"],
        w3=params["w3"], b3=params["b3"],
        w_heads=w_heads, b_heads=b_heads,
    )


def pedm_ref(x, params, *, obs_dim):
    """Pure-JAX reference mirroring the PyTorch forward (training-mode BatchNorm)."""
    obs = x[:, :obs_dim]
    act = x[:, obs_dim].astype(jnp.int32)
    emb = params["emb"][act]
    h = jnp.concatenate([obs, emb], axis=-1)

    def bn(h, g, b):
        m = jnp.mean(h, axis=0, keepdims=True)
        v = jnp.mean((h - m) ** 2, axis=0, keepdims=True)
        return (h - m) / jnp.sqrt(v + BN_EPS) * g + b

    h = jnp.maximum(bn(h @ params["w1"] + params["b1"], params["g1"], params["be1"]), 0.0)
    h = jnp.maximum(bn(h @ params["w2"] + params["b2"], params["g2"], params["be2"]), 0.0)
    h = jnp.maximum(h @ params["w3"] + params["b3"], 0.0)
    mu = h @ params["w_mu"] + params["b_mu"]
    var = jnp.exp(h @ params["w_var"] + params["b_var"])  # NOTE: spec does not clamp log_var
    return jnp.concatenate([mu, var], axis=-1)


if __name__ == "__main__":
    obs_dim, num_actions, action_embed_dim, hidden_dim, batch = 16, 4, 8, 32, 8

    key = jax.random.PRNGKey(0)
    kp, kobs, kact = jax.random.split(key, 3)
    params = init_params(kp, obs_dim, num_actions, action_embed_dim, hidden_dim)
    kparams = prepare_kernel_params(params, obs_dim=obs_dim)

    obs = jax.random.normal(kobs, (batch, obs_dim), jnp.float32)
    act = jax.random.randint(kact, (batch, 1), 0, num_actions).astype(jnp.float32)
    x = jnp.concatenate([obs, act], axis=-1)  # [batch, obs_dim + 1] (discrete action idx)

    out = pedm_forward(x, kparams, obs_dim=obs_dim, num_actions=num_actions,
                       hidden_dim=hidden_dim)
    out = jax.block_until_ready(out)

    ref = pedm_ref(x, params, obs_dim=obs_dim)
    assert out.shape == (batch, 2 * obs_dim)
    np.testing.assert_allclose(np.asarray(out), np.asarray(ref), rtol=1e-2, atol=1e-2)
    print("KERNEL_OK")
</pallas_src>

<mosaic_0001>
module attributes {stable_mosaic.version = 11 : i64} {
  func.func @kernel(%arg0: memref<8x16xf32, #tpu.memory_space<vmem>>, %arg1: memref<8x1xi32, #tpu.memory_space<vmem>>, %arg2: memref<16x32xf32, #tpu.memory_space<vmem>>, %arg3: memref<4x32xf32, #tpu.memory_space<vmem>>, %arg4: memref<1x32xf32, #tpu.memory_space<vmem>>, %arg5: memref<1x32xf32, #tpu.memory_space<vmem>>, %arg6: memref<1x32xf32, #tpu.memory_space<vmem>>, %arg7: memref<32x32xf32, #tpu.memory_space<vmem>>, %arg8: memref<1x32xf32, #tpu.memory_space<vmem>>, %arg9: memref<1x32xf32, #tpu.memory_space<vmem>>, %arg10: memref<1x32xf32, #tpu.memory_space<vmem>>, %arg11: memref<32x32xf32, #tpu.memory_space<vmem>>, %arg12: memref<1x32xf32, #tpu.memory_space<vmem>>, %arg13: memref<32x32xf32, #tpu.memory_space<vmem>>, %arg14: memref<1x32xf32, #tpu.memory_space<vmem>>, %arg15: memref<8x32xf32, #tpu.memory_space<vmem>>) attributes {dimension_semantics = [], scalar_prefetch = 0 : i64, scratch_operands = 0 : i64, tpu.core_type = #tpu.core_type<tc>} {
    %c0 = arith.constant 0 : index
    %c0_0 = arith.constant 0 : index
    %0 = vector.load %arg0[%c0, %c0_0] : memref<8x16xf32, #tpu.memory_space<vmem>>, vector<8x16xf32>
    %c0_1 = arith.constant 0 : index
    %c0_2 = arith.constant 0 : index
    %1 = vector.load %arg1[%c0_1, %c0_2] : memref<8x1xi32, #tpu.memory_space<vmem>>, vector<8x1xi32>
    %2 = tpu.iota {dimensions = array<i32: 1>} : vector<8x4xi32>
    %3 = vector.broadcast %1 : vector<8x1xi32> to vector<8x4xi32>
    %4 = arith.cmpi eq, %2, %3 : vector<8x4xi32>
    %5 = arith.extui %4 : vector<8x4xi1> to vector<8x4xi32>
    %6 = arith.sitofp %5 : vector<8x4xi32> to vector<8x4xf32>
    %c0_3 = arith.constant 0 : index
    %c0_4 = arith.constant 0 : index
    %7 = vector.load %arg2[%c0_3, %c0_4] : memref<16x32xf32, #tpu.memory_space<vmem>>, vector<16x32xf32>
    %cst = arith.constant dense<0.000000e+00> : vector<8x32xf32>
    %8 = tpu.matmul %0, %7, %cst {dimension_numbers = #tpu.dot_dimension_numbers<[1], [0], [0], [1], [0, 0, 1, 1], [], []>} : vector<8x16xf32>, vector<16x32xf32>, vector<8x32xf32> -> vector<8x32xf32>
    %c0_5 = arith.constant 0 : index
    %c0_6 = arith.constant 0 : index
    %9 = vector.load %arg3[%c0_5, %c0_6] : memref<4x32xf32, #tpu.memory_space<vmem>>, vector<4x32xf32>
    %cst_7 = arith.constant dense<0.000000e+00> : vector<8x32xf32>
    %10 = tpu.matmul %6, %9, %cst_7 {dimension_numbers = #tpu.dot_dimension_numbers<[1], [0], [0], [1], [0, 0, 1, 1], [], []>} : vector<8x4xf32>, vector<4x32xf32>, vector<8x32xf32> -> vector<8x32xf32>
    %11 = arith.addf %8, %10 : vector<8x32xf32>
    %c0_8 = arith.constant 0 : index
    %c0_9 = arith.constant 0 : index
    %12 = vector.load %arg4[%c0_8, %c0_9] : memref<1x32xf32, #tpu.memory_space<vmem>>, vector<1x32xf32>
    %13 = vector.broadcast %12 : vector<1x32xf32> to vector<8x32xf32>
    %14 = arith.addf %11, %13 : vector<8x32xf32>
    %cst_10 = arith.constant dense<0.000000e+00> : vector<32xf32>
    %15 = vector.multi_reduction <add>, %14, %cst_10 [0] : vector<8x32xf32> to vector<32xf32>
    %16 = vector.shape_cast %15 : vector<32xf32> to vector<1x32xf32>
    %cst_11 = arith.constant 1.250000e-01 : f32
    %17 = vector.broadcast %cst_11 : f32 to vector<1x32xf32>
    %18 = arith.mulf %16, %17 : vector<1x32xf32>
    %19 = arith.mulf %14, %14 : vector<8x32xf32>
    %cst_12 = arith.constant dense<0.000000e+00> : vector<32xf32>
    %20 = vector.multi_reduction <add>, %19, %cst_12 [0] : vector<8x32xf32> to vector<32xf32>
    %21 = vector.shape_cast %20 : vector<32xf32> to vector<1x32xf32>
    %cst_13 = arith.constant 1.250000e-01 : f32
    %22 = vector.broadcast %cst_13 : f32 to vector<1x32xf32>
    %23 = arith.mulf %21, %22 : vector<1x32xf32>
    %24 = arith.mulf %18, %18 : vector<1x32xf32>
    %25 = arith.subf %23, %24 : vector<1x32xf32>
    %cst_14 = arith.constant 0.000000e+00 : f32
    %26 = vector.broadcast %cst_14 : f32 to vector<1x32xf32>
    %27 = arith.maximumf %25, %26 : vector<1x32xf32>
    %28 = vector.broadcast %18 : vector<1x32xf32> to vector<8x32xf32>
    %29 = arith.subf %14, %28 : vector<8x32xf32>
    %cst_15 = arith.constant 9.99999974E-6 : f32
    %30 = vector.broadcast %cst_15 : f32 to vector<1x32xf32>
    %31 = arith.addf %27, %30 : vector<1x32xf32>
    %32 = math.rsqrt %31 : vector<1x32xf32>
    %33 = vector.broadcast %32 : vector<1x32xf32> to vector<8x32xf32>
    %34 = arith.mulf %29, %33 : vector<8x32xf32>
    %c0_16 = arith.constant 0 : index
    %c0_17 = arith.constant 0 : index
    %35 = vector.load %arg5[%c0_16, %c0_17] : memref<1x32xf32, #tpu.memory_space<vmem>>, vector<1x32xf32>
    %36 = vector.broadcast %35 : vector<1x32xf32> to vector<8x32xf32>
    %37 = arith.mulf %34, %36 : vector<8x32xf32>
    %c0_18 = arith.constant 0 : index
    %c0_19 = arith.constant 0 : index
    %38 = vector.load %arg6[%c0_18, %c0_19] : memref<1x32xf32, #tpu.memory_space<vmem>>, vector<1x32xf32>
    %39 = vector.broadcast %38 : vector<1x32xf32> to vector<8x32xf32>
    %40 = arith.addf %37, %39 : vector<8x32xf32>
    %cst_20 = arith.constant 0.000000e+00 : f32
    %41 = vector.broadcast %cst_20 : f32 to vector<8x32xf32>
    %42 = arith.maximumf %40, %41 : vector<8x32xf32>
    %c0_21 = arith.constant 0 : index
    %c0_22 = arith.constant 0 : index
    %43 = vector.load %arg7[%c0_21, %c0_22] : memref<32x32xf32, #tpu.memory_space<vmem>>, vector<32x32xf32>
    %cst_23 = arith.constant dense<0.000000e+00> : vector<8x32xf32>
    %44 = tpu.matmul %42, %43, %cst_23 {dimension_numbers = #tpu.dot_dimension_numbers<[1], [0], [0], [1], [0, 0, 1, 1], [], []>} : vector<8x32xf32>, vector<32x32xf32>, vector<8x32xf32> -> vector<8x32xf32>
    %c0_24 = arith.constant 0 : index
    %c0_25 = arith.constant 0 : index
    %45 = vector.load %arg8[%c0_24, %c0_25] : memref<1x32xf32, #tpu.memory_space<vmem>>, vector<1x32xf32>
    %46 = vector.broadcast %45 : vector<1x32xf32> to vector<8x32xf32>
    %47 = arith.addf %44, %46 : vector<8x32xf32>
    %cst_26 = arith.constant dense<0.000000e+00> : vector<32xf32>
    %48 = vector.multi_reduction <add>, %47, %cst_26 [0] : vector<8x32xf32> to vector<32xf32>
    %49 = vector.shape_cast %48 : vector<32xf32> to vector<1x32xf32>
    %cst_27 = arith.constant 1.250000e-01 : f32
    %50 = vector.broadcast %cst_27 : f32 to vector<1x32xf32>
    %51 = arith.mulf %49, %50 : vector<1x32xf32>
    %52 = arith.mulf %47, %47 : vector<8x32xf32>
    %cst_28 = arith.constant dense<0.000000e+00> : vector<32xf32>
    %53 = vector.multi_reduction <add>, %52, %cst_28 [0] : vector<8x32xf32> to vector<32xf32>
    %54 = vector.shape_cast %53 : vector<32xf32> to vector<1x32xf32>
    %cst_29 = arith.constant 1.250000e-01 : f32
    %55 = vector.broadcast %cst_29 : f32 to vector<1x32xf32>
    %56 = arith.mulf %54, %55 : vector<1x32xf32>
    %57 = arith.mulf %51, %51 : vector<1x32xf32>
    %58 = arith.subf %56, %57 : vector<1x32xf32>
    %cst_30 = arith.constant 0.000000e+00 : f32
    %59 = vector.broadcast %cst_30 : f32 to vector<1x32xf32>
    %60 = arith.maximumf %58, %59 : vector<1x32xf32>
    %61 = vector.broadcast %51 : vector<1x32xf32> to vector<8x32xf32>
    %62 = arith.subf %47, %61 : vector<8x32xf32>
    %cst_31 = arith.constant 9.99999974E-6 : f32
    %63 = vector.broadcast %cst_31 : f32 to vector<1x32xf32>
    %64 = arith.addf %60, %63 : vector<1x32xf32>
    %65 = math.rsqrt %64 : vector<1x32xf32>
    %66 = vector.broadcast %65 : vector<1x32xf32> to vector<8x32xf32>
    %67 = arith.mulf %62, %66 : vector<8x32xf32>
    %c0_32 = arith.constant 0 : index
    %c0_33 = arith.constant 0 : index
    %68 = vector.load %arg9[%c0_32, %c0_33] : memref<1x32xf32, #tpu.memory_space<vmem>>, vector<1x32xf32>
    %69 = vector.broadcast %68 : vector<1x32xf32> to vector<8x32xf32>
    %70 = arith.mulf %67, %69 : vector<8x32xf32>
    %c0_34 = arith.constant 0 : index
    %c0_35 = arith.constant 0 : index
    %71 = vector.load %arg10[%c0_34, %c0_35] : memref<1x32xf32, #tpu.memory_space<vmem>>, vector<1x32xf32>
    %72 = vector.broadcast %71 : vector<1x32xf32> to vector<8x32xf32>
    %73 = arith.addf %70, %72 : vector<8x32xf32>
    %cst_36 = arith.constant 0.000000e+00 : f32
    %74 = vector.broadcast %cst_36 : f32 to vector<8x32xf32>
    %75 = arith.maximumf %73, %74 : vector<8x32xf32>
    %c0_37 = arith.constant 0 : index
    %c0_38 = arith.constant 0 : index
    %76 = vector.load %arg11[%c0_37, %c0_38] : memref<32x32xf32, #tpu.memory_space<vmem>>, vector<32x32xf32>
    %cst_39 = arith.constant dense<0.000000e+00> : vector<8x32xf32>
    %77 = tpu.matmul %75, %76, %cst_39 {dimension_numbers = #tpu.dot_dimension_numbers<[1], [0], [0], [1], [0, 0, 1, 1], [], []>} : vector<8x32xf32>, vector<32x32xf32>, vector<8x32xf32> -> vector<8x32xf32>
    %c0_40 = arith.constant 0 : index
    %c0_41 = arith.constant 0 : index
    %78 = vector.load %arg12[%c0_40, %c0_41] : memref<1x32xf32, #tpu.memory_space<vmem>>, vector<1x32xf32>
    %79 = vector.broadcast %78 : vector<1x32xf32> to vector<8x32xf32>
    %80 = arith.addf %77, %79 : vector<8x32xf32>
    %cst_42 = arith.constant 0.000000e+00 : f32
    %81 = vector.broadcast %cst_42 : f32 to vector<8x32xf32>
    %82 = arith.maximumf %80, %81 : vector<8x32xf32>
    %c0_43 = arith.constant 0 : index
    %c0_44 = arith.constant 0 : index
    %83 = vector.load %arg13[%c0_43, %c0_44] : memref<32x32xf32, #tpu.memory_space<vmem>>, vector<32x32xf32>
    %cst_45 = arith.constant dense<0.000000e+00> : vector<8x32xf32>
    %84 = tpu.matmul %82, %83, %cst_45 {dimension_numbers = #tpu.dot_dimension_numbers<[1], [0], [0], [1], [0, 0, 1, 1], [], []>} : vector<8x32xf32>, vector<32x32xf32>, vector<8x32xf32> -> vector<8x32xf32>
    %c0_46 = arith.constant 0 : index
    %c0_47 = arith.constant 0 : index
    %85 = vector.load %arg14[%c0_46, %c0_47] : memref<1x32xf32, #tpu.memory_space<vmem>>, vector<1x32xf32>
    %86 = vector.broadcast %85 : vector<1x32xf32> to vector<8x32xf32>
    %87 = arith.addf %84, %86 : vector<8x32xf32>
    %88 = tpu.iota {dimensions = array<i32: 1>} : vector<8x32xi32>
    %c16_i32 = arith.constant 16 : i32
    %89 = vector.broadcast %c16_i32 : i32 to vector<8x32xi32>
    %90 = arith.cmpi slt, %88, %89 : vector<8x32xi32>
    %91 = math.exp %87 : vector<8x32xf32>
    %92 = arith.select %90, %87, %91 : vector<8x32xi1>, vector<8x32xf32>
    %c0_48 = arith.constant 0 : index
    %c0_49 = arith.constant 0 : index
    %93 = vector.load %arg15[%c0_48, %c0_49] : memref<8x32xf32, #tpu.memory_space<vmem>>, vector<8x32xf32>
    tpu.vector_store %arg15[%c0_48, %c0_49], %92 {strides = array<i32>} : memref<8x32xf32, #tpu.memory_space<vmem>>, vector<8x32xf32>,
    return
  }
}

</mosaic_0001>

<llo_original>
// kernel: tpu_custom_call.1
$region0: #{tpu_custom_call.1}
  #allocation0 [shape = 'u32[]', space=smem, size = 0x4, offset = 0x4, fixed_abs, tag = 'smem constant byte address 0x4 - core index']
  #allocation1 [shape = 'u32[144,128]{1,0:T(1,128)}', space=vmem, size = 0x12000, scoped, tag = 'internal scratch']
  %s0 = inlined_call_operand.hbm [shape: f32[8,16], index: 0, kind: input, shape index: {}]
  %s1 = inlined_call_operand.vmem [shape: s32[8,1], index: 1, kind: input, shape index: {}]
  %s2 = inlined_call_operand.hbm [shape: f32[16,32], index: 2, kind: input, shape index: {}]
  %s3 = inlined_call_operand.hbm [shape: f32[4,32], index: 3, kind: input, shape index: {}]
  %s4 = inlined_call_operand.hbm [shape: f32[1,32], index: 4, kind: input, shape index: {}]
  %s5 = inlined_call_operand.hbm [shape: f32[1,32], index: 5, kind: input, shape index: {}]
  %s6 = inlined_call_operand.hbm [shape: f32[1,32], index: 6, kind: input, shape index: {}]
  %s7 = inlined_call_operand.hbm [shape: f32[32,32], index: 7, kind: input, shape index: {}]
  %s8 = inlined_call_operand.hbm [shape: f32[1,32], index: 8, kind: input, shape index: {}]
  %s9 = inlined_call_operand.hbm [shape: f32[1,32], index: 9, kind: input, shape index: {}]
  %s10 = inlined_call_operand.hbm [shape: f32[1,32], index: 10, kind: input, shape index: {}]
  %s11 = inlined_call_operand.hbm [shape: f32[32,32], index: 11, kind: input, shape index: {}]
  %s12 = inlined_call_operand.hbm [shape: f32[1,32], index: 12, kind: input, shape index: {}]
  %s13 = inlined_call_operand.vmem [shape: f32[32,32], index: 13, kind: input, shape index: {}]
  %s14 = inlined_call_operand.vmem [shape: f32[1,32], index: 14, kind: input, shape index: {}]
  %s15 = inlined_call_operand.hbm [shape: f32[8,32], index: 15, kind: output, shape index: {}]
  %s16 = sld [smem:[#allocation0]]
  $region118: #{tpu_custom_call.1} parent=0
    _
  %s18 = ssub.s32 1, %s16
  %s19 = scalar_select 0, %s18, %s16
  $region1: #{tpu_custom_call.1} parent=0
    #allocation2 [shape = 'u8[4096]{0}', space=vmem, size = 0x1000, scoped, tag = 'input window, operand 0, single buffered']
    #allocation3 [shape = 's32[1]{0}', space=sflag, size = 0x4, scoped, tag = 'scoped memory for tpu_custom_call.1']
    #allocation4 [shape = 's32[1]{0}', space=sflag, size = 0x4, scoped, tag = 'scoped memory for tpu_custom_call.1']
    #allocation5 [shape = 'u8[8192]{0}', space=vmem, size = 0x2000, scoped, tag = 'input window, operand 2, single buffered']
    #allocation6 [shape = 's32[1]{0}', space=sflag, size = 0x4, scoped, tag = 'scoped memory for tpu_custom_call.1']
    #allocation7 [shape = 'u8[2048]{0}', space=vmem, size = 0x800, scoped, tag = 'input window, operand 3, single buffered']
    #allocation8 [shape = 'u8[512]{0}', space=vmem, size = 0x400, scoped, tag = 'input window, operand 4, single buffered']
    #allocation9 [shape = 's32[1]{0}', space=sflag, size = 0x4, scoped, tag = 'scoped memory for tpu_custom_call.1']
    #allocation10 [shape = 'u8[512]{0}', space=vmem, size = 0x400, scoped, tag = 'input window, operand 5, single buffered']
    #allocation11 [shape = 'u8[512]{0}', space=vmem, size = 0x400, scoped, tag = 'input window, operand 6, single buffered']
    #allocation12 [shape = 's32[1]{0}', space=sflag, size = 0x4, scoped, tag = 'scoped memory for tpu_custom_call.1']
    #allocation13 [shape = 'u8[16384]{0}', space=vmem, size = 0x4000, scoped, tag = 'input window, operand 7, single buffered']
    #allocation14 [shape = 'u8[512]{0}', space=vmem, size = 0x400, scoped, tag = 'input window, operand 8, single buffered']
    #allocation15 [shape = 's32[1]{0}', space=sflag, size = 0x4, scoped, tag = 'scoped memory for tpu_custom_call.1']
    #allocation16 [shape = 'u8[512]{0}', space=vmem, size = 0x400, scoped, tag = 'input window, operand 9, single buffered']
    #allocation17 [shape = 'u8[512]{0}', space=vmem, size = 0x400, scoped, tag = 'input window, operand 10, single buffered']
    #allocation18 [shape = 's32[1]{0}', space=sflag, size = 0x4, scoped, tag = 'scoped memory for tpu_custom_call.1']
    #allocation19 [shape = 'u8[16384]{0}', space=vmem, size = 0x4000, scoped, tag = 'input window, operand 11, single buffered']
    #allocation20 [shape = 'u8[512]{0}', space=vmem, size = 0x400, scoped, tag = 'input window, operand 12, single buffered']
    #allocation21 [shape = 's32[1]{0}', space=sflag, size = 0x4, scoped, tag = 'scoped memory for tpu_custom_call.1']
    #allocation22 [shape = 'u8[4096]{0}', space=vmem, size = 0x1000, scoped, tag = 'output window, operand 0, single buffered']
    %20 = vsyncpa [#allocation3], 0
    %21 = vsyncpa [#allocation6], 0
    %22 = vsyncpa [#allocation9], 0
    %23 = vsyncpa [#allocation12], 0
    %24 = vsyncpa [#allocation15], 0
    %25 = vsyncpa [#allocation18], 0
    %26 = vsyncpa [#allocation21], 0
    %27 = vsyncpa [#allocation4], 0
    // Predicated region
    $region2: #{tpu_custom_call.1} parent=1 // pred_check
      _
    $region3: #{tpu_custom_call.1} parent=1 // pred_check_branch
      %29 = sbr.rel (0) target = $region5
    $region4: #{tpu_custom_call.1} parent=1 // pred_region
      %s31 = ssub.s32 128, 128
      %32 = vsyncadd [#allocation3], %s31
      %s34 = sshll.u32 [#allocation2], 4
      %s35 = int_to_ptr.vmem [resolvable:$true] %s34
      %37 = dma.hbm_to_vmem [thread:$0]  %s0, 128, %s35, [#allocation3]
    $region5: #{tpu_custom_call.1} parent=1 // pred_fallthru
      _
    // Predicated region
    $region6: #{tpu_custom_call.1} parent=1 // pred_check
      _
    $region7: #{tpu_custom_call.1} parent=1 // pred_check_branch
      %39 = sbr.rel (0) target = $region9
    $region8: #{tpu_custom_call.1} parent=1 // pred_region
      _
    $region9: #{tpu_custom_call.1} parent=1 // pred_fallthru
      _
    // Predicated region
    $region10: #{tpu_custom_call.1} parent=1 // pred_check
      _
    $region11: #{tpu_custom_call.1} parent=1 // pred_check_branch
      %41 = sbr.rel (0) target = $region13
    $region12: #{tpu_custom_call.1} parent=1 // pred_region
      %s43 = ssub.s32 256, 256
      %44 = vsyncadd [#allocation6], %s43
      %s45 = sshll.u32 [#allocation5], 4
      %s46 = int_to_ptr.vmem [resolvable:$true] %s45
      %51 = dma.hbm_to_vmem [thread:$0]  %s2, 256, %s46, [#allocation6], 128, 128, 8
    $region13: #{tpu_custom_call.1} parent=1 // pred_fallthru
      _
    // Predicated region
    $region14: #{tpu_custom_call.1} parent=1 // pred_check
      _
    $region15: #{tpu_custom_call.1} parent=1 // pred_check_branch
      %53 = sbr.rel (0) target = $region17
    $region16: #{tpu_custom_call.1} parent=1 // pred_region
      %s55 = ssub.s32 64, 64
      %56 = vsyncadd [#allocation6], %s55
      %s58 = sshll.u32 [#allocation7], 4
      %s59 = int_to_ptr.vmem [resolvable:$true] %s58
      %61 = dma.hbm_to_vmem [thread:$0]  %s3, 64, %s59, [#allocation6]
    $region17: #{tpu_custom_call.1} parent=1 // pred_fallthru
      _
    // Predicated region
    $region18: #{tpu_custom_call.1} parent=1 // pred_check
      _
    $region19: #{tpu_custom_call.1} parent=1 // pred_check_branch
      %63 = sbr.rel (0) target = $region21
    $region20: #{tpu_custom_call.1} parent=1 // pred_region
      %s65 = ssub.s32 16, 16
      %66 = vsyncadd [#allocation9], %s65
      %s68 = sshll.u32 [#allocation8], 4
      %s69 = int_to_ptr.vmem [resolvable:$true] %s68
      %71 = dma.hbm_to_vmem [thread:$0]  %s4, 16, %s69, [#allocation9]
    $region21: #{tpu_custom_call.1} parent=1 // pred_fallthru
      _
    // Predicated region
    $region22: #{tpu_custom_call.1} parent=1 // pred_check
      _
    $region23: #{tpu_custom_call.1} parent=1 // pred_check_branch
      %73 = sbr.rel (0) target = $region25
    $region24: #{tpu_custom_call.1} parent=1 // pred_region
      %s75 = ssub.s32 16, 16
      %76 = vsyncadd [#allocation9], %s75
      %s78 = sshll.u32 [#allocation10], 4
      %s79 = int_to_ptr.vmem [resolvable:$true] %s78
      %81 = dma.hbm_to_vmem [thread:$0]  %s5, 16, %s79, [#allocation9]
    $region25: #{tpu_custom_call.1} parent=1 // pred_fallthru
      _
    // Predicated region
    $region26: #{tpu_custom_call.1} parent=1 // pred_check
      _
    $region27: #{tpu_custom_call.1} parent=1 // pred_check_branch
      %83 = sbr.rel (0) target = $region29
    $region28: #{tpu_custom_call.1} parent=1 // pred_region
      %s85 = ssub.s32 16, 16
      %86 = vsyncadd [#allocation12], %s85
      %s88 = sshll.u32 [#allocation11], 4
      %s89 = int_to_ptr.vmem [resolvable:$true] %s88
      %91 = dma.hbm_to_vmem [thread:$0]  %s6, 16, %s89, [#allocation12]
    $region29: #{tpu_custom_call.1} parent=1 // pred_fallthru
      _
    // Predicated region
    $region30: #{tpu_custom_call.1} parent=1 // pred_check
      _
    $region31: #{tpu_custom_call.1} parent=1 // pred_check_branch
      %93 = sbr.rel (0) target = $region33
    $region32: #{tpu_custom_call.1} parent=1 // pred_region
      %s95 = ssub.s32 512, 512
      %96 = vsyncadd [#allocation12], %s95
      %s97 = sshll.u32 [#allocation13], 4
      %s98 = int_to_ptr.vmem [resolvable:$true] %s97
      %103 = dma.hbm_to_vmem [thread:$0]  %s7, 512, %s98, [#allocation12], 128, 128, 8
    $region33: #{tpu_custom_call.1} parent=1 // pred_fallthru
      _
    // Predicated region
    $region34: #{tpu_custom_call.1} parent=1 // pred_check
      _
    $region35: #{tpu_custom_call.1} parent=1 // pred_check_branch
      %105 = sbr.rel (0) target = $region37
    $region36: #{tpu_custom_call.1} parent=1 // pred_region
      %s107 = ssub.s32 16, 16
      %108 = vsyncadd [#allocation15], %s107
      %s110 = sshll.u32 [#allocation14], 4
      %s111 = int_to_ptr.vmem [resolvable:$true] %s110
      %113 = dma.hbm_to_vmem [thread:$0]  %s8, 16, %s111, [#allocation15]
    $region37: #{tpu_custom_call.1} parent=1 // pred_fallthru
      _
    // Predicated region
    $region38: #{tpu_custom_call.1} parent=1 // pred_check
      _
    $region39: #{tpu_custom_call.1} parent=1 // pred_check_branch
      %115 = sbr.rel (0) target = $region41
    $region40: #{tpu_custom_call.1} parent=1 // pred_region
      %s117 = ssub.s32 16, 16
      %118 = vsyncadd [#allocation15], %s117
      %s120 = sshll.u32 [#allocation16], 4
      %s121 = int_to_ptr.vmem [resolvable:$true] %s120
      %123 = dma.hbm_to_vmem [thread:$0]  %s9, 16, %s121, [#allocation15]
    $region41: #{tpu_custom_call.1} parent=1 // pred_fallthru
      _
    // Predicated region
    $region42: #{tpu_custom_call.1} parent=1 // pred_check
      _
    $region43: #{tpu_custom_call.1} parent=1 // pred_check_branch
      %125 = sbr.rel (0) target = $region45
    $region44: #{tpu_custom_call.1} parent=1 // pred_region
      %s127 = ssub.s32 16, 16
      %128 = vsyncadd [#allocation18], %s127
      %s130 = sshll.u32 [#allocation17], 4
      %s131 = int_to_ptr.vmem [resolvable:$true] %s130
      %133 = dma.hbm_to_vmem [thread:$0]  %s10, 16, %s131, [#allocation18]
    $region45: #{tpu_custom_call.1} parent=1 // pred_fallthru
      _
    // Predicated region
    $region46: #{tpu_custom_call.1} parent=1 // pred_check
      _
    $region47: #{tpu_custom_call.1} parent=1 // pred_check_branch
      %135 = sbr.rel (0) target = $region49
    $region48: #{tpu_custom_call.1} parent=1 // pred_region
      %s137 = ssub.s32 512, 512
      %138 = vsyncadd [#allocation18], %s137
      %s139 = sshll.u32 [#allocation19], 4
      %s140 = int_to_ptr.vmem [resolvable:$true] %s139
      %145 = dma.hbm_to_vmem [thread:$0]  %s11, 512, %s140, [#allocation18], 128, 128, 8
    $region49: #{tpu_custom_call.1} parent=1 // pred_fallthru
      _
    // Predicated region
    $region50: #{tpu_custom_call.1} parent=1 // pred_check
      _
    $region51: #{tpu_custom_call.1} parent=1 // pred_check_branch
      %147 = sbr.rel (0) target = $region53
    $region52: #{tpu_custom_call.1} parent=1 // pred_region
      %s149 = ssub.s32 16, 16
      %150 = vsyncadd [#allocation21], %s149
      %s152 = sshll.u32 [#allocation20], 4
      %s153 = int_to_ptr.vmem [resolvable:$true] %s152
      %155 = dma.hbm_to_vmem [thread:$0]  %s12, 16, %s153, [#allocation21]
    $region53: #{tpu_custom_call.1} parent=1 // pred_fallthru
      _
    // Predicated region
    $region54: #{tpu_custom_call.1} parent=1 // pred_check
      _
    $region55: #{tpu_custom_call.1} parent=1 // pred_check_branch
      %157 = sbr.rel (0) target = $region57
    $region56: #{tpu_custom_call.1} parent=1 // pred_region
      _
    $region57: #{tpu_custom_call.1} parent=1 // pred_fallthru
      _
    // Predicated region
    $region58: #{tpu_custom_call.1} parent=1 // pred_check
      _
    $region59: #{tpu_custom_call.1} parent=1 // pred_check_branch
      %159 = sbr.rel (0) target = $region61
    $region60: #{tpu_custom_call.1} parent=1 // pred_region
      _
    $region61: #{tpu_custom_call.1} parent=1 // pred_fallthru
      _
    // Predicated region
    $region62: #{tpu_custom_call.1} parent=1 // pred_check
      _
    $region63: #{tpu_custom_call.1} parent=1 // pred_check_branch
      %161 = sbr.rel (0) target = $region65
    $region64: #{tpu_custom_call.1} parent=1 // pred_region
      %162 = dma.done [#allocation3], 128
    $region65: #{tpu_custom_call.1} parent=1 // pred_fallthru
      _
    // Predicated region
    $region66: #{tpu_custom_call.1} parent=1 // pred_check
      _
    $region67: #{tpu_custom_call.1} parent=1 // pred_check_branch
      %164 = sbr.rel (0) target = $region69
    $region68: #{tpu_custom_call.1} parent=1 // pred_region
      %165 = dma.done [#allocation6], 256
    $region69: #{tpu_custom_call.1} parent=1 // pred_fallthru
      _
    // Predicated region
    $region70: #{tpu_custom_call.1} parent=1 // pred_check
      _
    $region71: #{tpu_custom_call.1} parent=1 // pred_check_branch
      %167 = sbr.rel (0) target = $region73
    $region72: #{tpu_custom_call.1} parent=1 // pred_region
      %168 = dma.done [#allocation6], 64
    $region73: #{tpu_custom_call.1} parent=1 // pred_fallthru
      _
    // Predicated region
    $region74: #{tpu_custom_call.1} parent=1 // pred_check
      _
    $region75: #{tpu_custom_call.1} parent=1 // pred_check_branch
      %170 = sbr.rel (0) target = $region77
    $region76: #{tpu_custom_call.1} parent=1 // pred_region
      %171 = dma.done [#allocation9], 16
    $region77: #{tpu_custom_call.1} parent=1 // pred_fallthru
      _
    // Predicated region
    $region78: #{tpu_custom_call.1} parent=1 // pred_check
      _
    $region79: #{tpu_custom_call.1} parent=1 // pred_check_branch
      %173 = sbr.rel (0) target = $region81
    $region80: #{tpu_custom_call.1} parent=1 // pred_region
      %174 = dma.done [#allocation9], 16
    $region81: #{tpu_custom_call.1} parent=1 // pred_fallthru
      _
    // Predicated region
    $region82: #{tpu_custom_call.1} parent=1 // pred_check
      _
    $region83: #{tpu_custom_call.1} parent=1 // pred_check_branch
      %176 = sbr.rel (0) target = $region85
    $region84: #{tpu_custom_call.1} parent=1 // pred_region
      %177 = dma.done [#allocation12], 16
    $region85: #{tpu_custom_call.1} parent=1 // pred_fallthru
      _
    // Predicated region
    $region86: #{tpu_custom_call.1} parent=1 // pred_check
      _
    $region87: #{tpu_custom_call.1} parent=1 // pred_check_branch
      %179 = sbr.rel (0) target = $region89
    $region88: #{tpu_custom_call.1} parent=1 // pred_region
      %180 = dma.done [#allocation12], 512
    $region89: #{tpu_custom_call.1} parent=1 // pred_fallthru
      _
    // Predicated region
    $region90: #{tpu_custom_call.1} parent=1 // pred_check
      _
    $region91: #{tpu_custom_call.1} parent=1 // pred_check_branch
      %182 = sbr.rel (0) target = $region93
    $region92: #{tpu_custom_call.1} parent=1 // pred_region
      %183 = dma.done [#allocation15], 16
    $region93: #{tpu_custom_call.1} parent=1 // pred_fallthru
      _
    // Predicated region
    $region94: #{tpu_custom_call.1} parent=1 // pred_check
      _
    $region95: #{tpu_custom_call.1} parent=1 // pred_check_branch
      %185 = sbr.rel (0) target = $region97
    $region96: #{tpu_custom_call.1} parent=1 // pred_region
      %186 = dma.done [#allocation15], 16
    $region97: #{tpu_custom_call.1} parent=1 // pred_fallthru
      _
    // Predicated region
    $region98: #{tpu_custom_call.1} parent=1 // pred_check
      _
    $region99: #{tpu_custom_call.1} parent=1 // pred_check_branch
      %188 = sbr.rel (0) target = $region101
    $region100: #{tpu_custom_call.1} parent=1 // pred_region
      %189 = dma.done [#allocation18], 16
    $region101: #{tpu_custom_call.1} parent=1 // pred_fallthru
      _
    // Predicated region
    $region102: #{tpu_custom_call.1} parent=1 // pred_check
      _
    $region103: #{tpu_custom_call.1} parent=1 // pred_check_branch
      %191 = sbr.rel (0) target = $region105
    $region104: #{tpu_custom_call.1} parent=1 // pred_region
      %192 = dma.done [#allocation18], 512
    $region105: #{tpu_custom_call.1} parent=1 // pred_fallthru
      _
    // Predicated region
    $region106: #{tpu_custom_call.1} parent=1 // pred_check
      _
    $region107: #{tpu_custom_call.1} parent=1 // pred_check_branch
      %194 = sbr.rel (0) target = $region109
    $region108: #{tpu_custom_call.1} parent=1 // pred_region
      %195 = dma.done [#allocation21], 16
    $region109: #{tpu_custom_call.1} parent=1 // pred_fallthru
      _
    %v196 = vld [vmem:[#allocation2] sm:$0xff]
    %v197 = vld [vmem:[%s1] sm:$0xff]
    %v198 = vlaneseq
    %v199 = vand.u32 %v198, 127
    %200 = vset.pattern.permute.xlu0 0
    %201 = vperm.xlu0 %200, %v197
    %v202 = vpop.permute.xlu0 %201
    %vm203 = vcmp.eq.s32.totalorder %v199, %v202
    %v204 = vsel %vm203, 1, 0
    %v205 = vcvt.s32.f32 %v204
    %v206 = vld [vmem:[#allocation5] sm:$0xff]
    %v207 = vld [vmem:[#allocation5 + $0x8] sm:$0xff]
    %v208 = vld [vmem:[#allocation7] sm:$0xf]
    %vm209 = vcmask 31744
    %v211 = vsel %vm209, %v205, 0
    %vm213 = vcmask 1043456
    %v215 = vsel %vm213, %v208, 0
    %217 = vmatprep.subr.mxu0 0.0
    %218 = vmatpush1.msra.mxu0 0.0
    %219 = vmatprep.subr.mxu0 0.0
    %220 = vmatpush1.msra.mxu0 0.0
    %221 = vmatprep.subr.mxu0 0.0
    %222 = vmatpush1.msra.mxu0 0.0
    %223 = vmatprep.subr.mxu0 0.0
    %224 = vmatpush1.msra.mxu0 0.0
    %225 = vmatprep.subr.mxu0 0.0
    %226 = vmatpush1.msra.mxu0 0.0
    %227 = vmatprep.subr.mxu0 0.0
    %228 = vmatpush1.msra.mxu0 0.0
    %229 = vmatprep.subr.mxu0 0.0
    %230 = vmatpush1.msra.mxu0 0.0
    %231 = vmatprep.subr.mxu0 0.0
    %232 = vmatpush1.msra.mxu0 0.0
    %233 = vmatprep.subr.mxu0 0.0
    %234 = vmatpush1.msra.mxu0 0.0
    %235 = vmatprep.subr.mxu0 0.0
    %236 = vmatpush1.msra.mxu0 0.0
    %237 = vmatprep.subr.mxu0 0.0
    %238 = vmatpush1.msra.mxu0 0.0
    %239 = vmatprep.subr.mxu0 0.0
    %240 = vmatpush1.msra.mxu0 0.0
    %241 = vmatprep.subr.mxu0 0.0
    %242 = vmatpush1.msra.mxu0 0.0
    %243 = vmatprep.subr.mxu0 0.0
    %244 = vmatpush1.msra.mxu0 0.0
    %245 = vmatprep.subr.mxu0 0.0
    %246 = vmatpush1.msra.mxu0 0.0
    %247 = vmatprep.subr.mxu0 0.0
    %248 = vmatpush1.msra.mxu0 %v215
    %249 = vmatprep.subr.mxu0 0.0
    %250 = vmatpush2.msra.mxu0 0.0
    %251 = vmatprep.subr.mxu0 0.0
    %252 = vmatpush2.msra.mxu0 0.0
    %253 = vmatprep.subr.mxu0 0.0
    %254 = vmatpush2.msra.mxu0 0.0
    %255 = vmatprep.subr.mxu0 0.0
    %256 = vmatpush2.msra.mxu0 0.0
    %257 = vmatprep.subr.mxu0 0.0
    %258 = vmatpush2.msra.mxu0 0.0
    %259 = vmatprep.subr.mxu0 0.0
    %260 = vmatpush2.msra.mxu0 0.0
    %261 = vmatprep.subr.mxu0 0.0
    %262 = vmatpush2.msra.mxu0 0.0
    %263 = vmatprep.subr.mxu0 0.0
    %264 = vmatpush2.msra.mxu0 0.0
    %265 = vmatprep.subr.mxu0 0.0
    %266 = vmatpush2.msra.mxu0 0.0
    %267 = vmatprep.subr.mxu0 0.0
    %268 = vmatpush2.msra.mxu0 0.0
    %269 = vmatprep.subr.mxu0 0.0
    %270 = vmatpush2.msra.mxu0 0.0
    %271 = vmatprep.subr.mxu0 0.0
    %272 = vmatpush2.msra.mxu0 0.0
    %273 = vmatprep.subr.mxu0 0.0
    %274 = vmatpush2.msra.mxu0 0.0
    %275 = vmatprep.subr.mxu0 0.0
    %276 = vmatpush2.msra.mxu0 0.0
    %277 = vmatprep.subr.mxu0 0.0
    %278 = vmatpush2.msra.mxu0 0.0
    %279 = vmatprep.subr.mxu0 0.0
    %280 = vmatpush2.msra.mxu0 0.0
    %281 = vmatprep.mubr.f32.mxu0 0.0
    %282 = vmatmul.mubr.f32.gmra.mxu0 %v211
    %v283 = vpop.f32.mrf.mxu0
    %v284 = vadd.f32 0.0, %v283
    %v285 = vpop.f32.mrf.mxu0
    %286 = vdwg.mxu0
    %vm287 = vcmask 130048
    %v289 = vsel %vm287, %v196, 0
    %291 = vmatprep.subr.mxu0 0.0
    %292 = vmatpush1.msra.mxu0 0.0
    %293 = vmatprep.subr.mxu0 0.0
    %294 = vmatpush1.msra.mxu0 0.0
    %295 = vmatprep.subr.mxu0 0.0
    %296 = vmatpush1.msra.mxu0 0.0
    %297 = vmatprep.subr.mxu0 0.0
    %298 = vmatpush1.msra.mxu0 0.0
    %299 = vmatprep.subr.mxu0 0.0
    %300 = vmatpush1.msra.mxu0 0.0
    %301 = vmatprep.subr.mxu0 0.0
    %302 = vmatpush1.msra.mxu0 0.0
    %303 = vmatprep.subr.mxu0 0.0
    %304 = vmatpush1.msra.mxu0 0.0
    %305 = vmatprep.subr.mxu0 0.0
    %306 = vmatpush1.msra.mxu0 0.0
    %307 = vmatprep.subr.mxu0 0.0
    %308 = vmatpush1.msra.mxu0 0.0
    %309 = vmatprep.subr.mxu0 0.0
    %310 = vmatpush1.msra.mxu0 0.0
    %311 = vmatprep.subr.mxu0 0.0
    %312 = vmatpush1.msra.mxu0 0.0
    %313 = vmatprep.subr.mxu0 0.0
    %314 = vmatpush1.msra.mxu0 0.0
    %315 = vmatprep.subr.mxu0 0.0
    %316 = vmatpush1.msra.mxu0 0.0
    %317 = vmatprep.subr.mxu0 0.0
    %318 = vmatpush1.msra.mxu0 0.0
    %319 = vmatprep.subr.mxu0 0.0
    %320 = vmatpush1.msra.mxu0 %v207
    %321 = vmatprep.subr.mxu0 0.0
    %322 = vmatpush1.msra.mxu0 %v206
    %323 = vmatprep.subr.mxu0 0.0
    %324 = vmatpush2.msra.mxu0 0.0
    %325 = vmatprep.subr.mxu0 0.0
    %326 = vmatpush2.msra.mxu0 0.0
    %327 = vmatprep.subr.mxu0 0.0
    %328 = vmatpush2.msra.mxu0 0.0
    %329 = vmatprep.subr.mxu0 0.0
    %330 = vmatpush2.msra.mxu0 0.0
    %331 = vmatprep.subr.mxu0 0.0
    %332 = vmatpush2.msra.mxu0 0.0
    %333 = vmatprep.subr.mxu0 0.0
    %334 = vmatpush2.msra.mxu0 0.0
    %335 = vmatprep.subr.mxu0 0.0
    %336 = vmatpush2.msra.mxu0 0.0
    %337 = vmatprep.subr.mxu0 0.0
    %338 = vmatpush2.msra.mxu0 0.0
    %339 = vmatprep.subr.mxu0 0.0
    %340 = vmatpush2.msra.mxu0 0.0
    %341 = vmatprep.subr.mxu0 0.0
    %342 = vmatpush2.msra.mxu0 0.0
    %343 = vmatprep.subr.mxu0 0.0
    %344 = vmatpush2.msra.mxu0 0.0
    %345 = vmatprep.subr.mxu0 0.0
    %346 = vmatpush2.msra.mxu0 0.0
    %347 = vmatprep.subr.mxu0 0.0
    %348 = vmatpush2.msra.mxu0 0.0
    %349 = vmatprep.subr.mxu0 0.0
    %350 = vmatpush2.msra.mxu0 0.0
    %351 = vmatprep.subr.mxu0 0.0
    %352 = vmatpush2.msra.mxu0 0.0
    %353 = vmatprep.subr.mxu0 0.0
    %354 = vmatpush2.msra.mxu0 0.0
    %355 = vmatprep.mubr.f32.mxu0 0.0
    %356 = vmatmul.mubr.f32.gmra.mxu0 %v289
    %v357 = vpop.f32.mrf.mxu0
    %v358 = vadd.f32 %v284, %v357
    %v359 = vpop.f32.mrf.mxu0
    %360 = vdwg.mxu0
    %v361 = vld [vmem:[#allocation8] sm:$0x1]
    %v363 = vlaneseq
    %v364 = vshrl.u32 %v363, 7
    %v365 = vsub.s32 0, %v364
    %v366 = vrot.slane %v361, %v365
    %v368 = vadd.f32 %v358, %v366
    %vm369 = vcmask 261120
    %v370 = vsel %vm369, %v368, 0.0
    %v371 = vrot.slane %v370, 4
    %v372 = vadd.f32 %v370, %v371
    %v373 = vrot.slane %v372, 2
    %v374 = vadd.f32 %v372, %v373
    %v375 = vrot.slane %v374, 1
    %v376 = vadd.f32 %v374, %v375
    %v377 = vmul.f32 %v376, 0.125
    %v378 = vmul.f32 %v368, %v368
    %v379 = vsel %vm369, %v378, 0.0
    %v380 = vrot.slane %v379, 4
    %v381 = vadd.f32 %v379, %v380
    %v382 = vrot.slane %v381, 2
    %v383 = vadd.f32 %v381, %v382
    %v384 = vrot.slane %v383, 1
    %v385 = vadd.f32 %v383, %v384
    %v386 = vmul.f32 %v385, 0.125
    %v387 = vmul.f32 %v377, %v377
    %v388 = vsub.f32 %v386, %v387
    %v389 = vmax.f32 %v388, 0.0
    %v390 = vsub.f32 %v368, %v377
    %v391 = vadd.f32 %v389, 1e-05
    %v392 = vrsqrt.pop %v391
    %v393 = vmul.f32 %v390, %v392
    %v394 = vld [vmem:[#allocation10] sm:$0x1]
    %v396 = vlaneseq
    %v397 = vshrl.u32 %v396, 7
    %v398 = vsub.s32 0, %v397
    %v399 = vrot.slane %v394, %v398
    %v401 = vmul.f32 %v393, %v399
    %v402 = vld [vmem:[#allocation11] sm:$0x1]
    %v404 = vlaneseq
    %v405 = vshrl.u32 %v404, 7
    %v406 = vsub.s32 0, %v405
    %v407 = vrot.slane %v402, %v406
    %v409 = vadd.f32 %v401, %v407
    %v410 = vmax.f32 %v409, 0.0
    %v411 = vld [vmem:[#allocation13] sm:$0xff]
    %v412 = vld [vmem:[#allocation13 + $0x8] sm:$0xff]
    %v413 = vld [vmem:[#allocation13 + $0x10] sm:$0xff]
    %v414 = vld [vmem:[#allocation13 + $0x18] sm:$0xff]
    %v415 = vld [vmem:[#allocation14] sm:$0x1]
    %v417 = vlaneseq
    %v418 = vshrl.u32 %v417, 7
    %v419 = vsub.s32 0, %v418
    %v420 = vrot.slane %v415, %v419
    %v423 = vsel %vm369, %v410, 0
    %425 = vmatprep.subr.mxu0 0.0
    %426 = vmatpush1.msra.mxu0 0.0
    %427 = vmatprep.subr.mxu0 0.0
    %428 = vmatpush1.msra.mxu0 0.0
    %429 = vmatprep.subr.mxu0 0.0
    %430 = vmatpush1.msra.mxu0 0.0
    %431 = vmatprep.subr.mxu0 0.0
    %432 = vmatpush1.msra.mxu0 0.0
    %433 = vmatprep.subr.mxu0 0.0
    %434 = vmatpush1.msra.mxu0 0.0
    %435 = vmatprep.subr.mxu0 0.0
    %436 = vmatpush1.msra.mxu0 0.0
    %437 = vmatprep.subr.mxu0 0.0
    %438 = vmatpush1.msra.mxu0 0.0
    %439 = vmatprep.subr.mxu0 0.0
    %440 = vmatpush1.msra.mxu0 0.0
    %441 = vmatprep.subr.mxu0 0.0
    %442 = vmatpush1.msra.mxu0 0.0
    %443 = vmatprep.subr.mxu0 0.0
    %444 = vmatpush1.msra.mxu0 0.0
    %445 = vmatprep.subr.mxu0 0.0
    %446 = vmatpush1.msra.mxu0 0.0
    %447 = vmatprep.subr.mxu0 0.0
    %448 = vmatpush1.msra.mxu0 0.0
    %449 = vmatprep.subr.mxu0 0.0
    %450 = vmatpush1.msra.mxu0 %v414
    %451 = vmatprep.subr.mxu0 0.0
    %452 = vmatpush1.msra.mxu0 %v413
    %453 = vmatprep.subr.mxu0 0.0
    %454 = vmatpush1.msra.mxu0 %v412
    %455 = vmatprep.subr.mxu0 0.0
    %456 = vmatpush1.msra.mxu0 %v411
    %457 = vmatprep.subr.mxu0 0.0
    %458 = vmatpush2.msra.mxu0 0.0
    %459 = vmatprep.subr.mxu0 0.0
    %460 = vmatpush2.msra.mxu0 0.0
    %461 = vmatprep.subr.mxu0 0.0
    %462 = vmatpush2.msra.mxu0 0.0
    %463 = vmatprep.subr.mxu0 0.0
    %464 = vmatpush2.msra.mxu0 0.0
    %465 = vmatprep.subr.mxu0 0.0
    %466 = vmatpush2.msra.mxu0 0.0
    %467 = vmatprep.subr.mxu0 0.0
    %468 = vmatpush2.msra.mxu0 0.0
    %469 = vmatprep.subr.mxu0 0.0
    %470 = vmatpush2.msra.mxu0 0.0
    %471 = vmatprep.subr.mxu0 0.0
    %472 = vmatpush2.msra.mxu0 0.0
    %473 = vmatprep.subr.mxu0 0.0
    %474 = vmatpush2.msra.mxu0 0.0
    %475 = vmatprep.subr.mxu0 0.0
    %476 = vmatpush2.msra.mxu0 0.0
    %477 = vmatprep.subr.mxu0 0.0
    %478 = vmatpush2.msra.mxu0 0.0
    %479 = vmatprep.subr.mxu0 0.0
    %480 = vmatpush2.msra.mxu0 0.0
    %481 = vmatprep.subr.mxu0 0.0
    %482 = vmatpush2.msra.mxu0 0.0
    %483 = vmatprep.subr.mxu0 0.0
    %484 = vmatpush2.msra.mxu0 0.0
    %485 = vmatprep.subr.mxu0 0.0
    %486 = vmatpush2.msra.mxu0 0.0
    %487 = vmatprep.subr.mxu0 0.0
    %488 = vmatpush2.msra.mxu0 0.0
    %489 = vmatprep.mubr.f32.mxu0 0.0
    %490 = vmatmul.mubr.f32.gmra.mxu0 %v423
    %v491 = vpop.f32.mrf.mxu0
    %v492 = vadd.f32 %v420, %v491
    %v493 = vpop.f32.mrf.mxu0
    %494 = vdwg.mxu0
    %v495 = vsel %vm369, %v492, 0.0
    %v496 = vrot.slane %v495, 4
    %v497 = vadd.f32 %v495, %v496
    %v498 = vrot.slane %v497, 2
    %v499 = vadd.f32 %v497, %v498
    %v500 = vrot.slane %v499, 1
    %v501 = vadd.f32 %v499, %v500
    %v502 = vmul.f32 %v501, 0.125
    %v503 = vmul.f32 %v492, %v492
    %v504 = vsel %vm369, %v503, 0.0
    %v505 = vrot.slane %v504, 4
    %v506 = vadd.f32 %v504, %v505
    %v507 = vrot.slane %v506, 2
    %v508 = vadd.f32 %v506, %v507
    %v509 = vrot.slane %v508, 1
    %v510 = vadd.f32 %v508, %v509
    %v511 = vmul.f32 %v510, 0.125
    %v512 = vmul.f32 %v502, %v502
    %v513 = vsub.f32 %v511, %v512
    %v514 = vmax.f32 %v513, 0.0
    %v515 = vsub.f32 %v492, %v502
    %v516 = vadd.f32 %v514, 1e-05
    %v517 = vrsqrt.pop %v516
    %v518 = vmul.f32 %v515, %v517
    %v519 = vld [vmem:[#allocation16] sm:$0x1]
    %v521 = vlaneseq
    %v522 = vshrl.u32 %v521, 7
    %v523 = vsub.s32 0, %v522
    %v524 = vrot.slane %v519, %v523
    %v526 = vmul.f32 %v518, %v524
    %v527 = vld [vmem:[#allocation17] sm:$0x1]
    %v529 = vlaneseq
    %v530 = vshrl.u32 %v529, 7
    %v531 = vsub.s32 0, %v530
    %v532 = vrot.slane %v527, %v531
    %v534 = vadd.f32 %v526, %v532
    %v535 = vmax.f32 %v534, 0.0
    %v536 = vld [vmem:[#allocation19] sm:$0xff]
    %v537 = vld [vmem:[#allocation19 + $0x8] sm:$0xff]
    %v538 = vld [vmem:[#allocation19 + $0x10] sm:$0xff]
    %v539 = vld [vmem:[#allocation19 + $0x18] sm:$0xff]
    %v540 = vld [vmem:[#allocation20] sm:$0x1]
    %v542 = vlaneseq
    %v543 = vshrl.u32 %v542, 7
    %v544 = vsub.s32 0, %v543
    %v545 = vrot.slane %v540, %v544
    %v548 = vsel %vm369, %v535, 0
    %550 = vmatprep.subr.mxu0 0.0
    %551 = vmatpush1.msra.mxu0 0.0
    %552 = vmatprep.subr.mxu0 0.0
    %553 = vmatpush1.msra.mxu0 0.0
    %554 = vmatprep.subr.mxu0 0.0
    %555 = vmatpush1.msra.mxu0 0.0
    %556 = vmatprep.subr.mxu0 0.0
    %557 = vmatpush1.msra.mxu0 0.0
    %558 = vmatprep.subr.mxu0 0.0
    %559 = vmatpush1.msra.mxu0 0.0
    %560 = vmatprep.subr.mxu0 0.0
    %561 = vmatpush1.msra.mxu0 0.0
    %562 = vmatprep.subr.mxu0 0.0
    %563 = vmatpush1.msra.mxu0 0.0
    %564 = vmatprep.subr.mxu0 0.0
    %565 = vmatpush1.msra.mxu0 0.0
    %566 = vmatprep.subr.mxu0 0.0
    %567 = vmatpush1.msra.mxu0 0.0
    %568 = vmatprep.subr.mxu0 0.0
    %569 = vmatpush1.msra.mxu0 0.0
    %570 = vmatprep.subr.mxu0 0.0
    %571 = vmatpush1.msra.mxu0 0.0
    %572 = vmatprep.subr.mxu0 0.0
    %573 = vmatpush1.msra.mxu0 0.0
    %574 = vmatprep.subr.mxu0 0.0
    %575 = vmatpush1.msra.mxu0 %v539
    %576 = vmatprep.subr.mxu0 0.0
    %577 = vmatpush1.msra.mxu0 %v538
    %578 = vmatprep.subr.mxu0 0.0
    %579 = vmatpush1.msra.mxu0 %v537
    %580 = vmatprep.subr.mxu0 0.0
    %581 = vmatpush1.msra.mxu0 %v536
    %582 = vmatprep.subr.mxu0 0.0
    %583 = vmatpush2.msra.mxu0 0.0
    %584 = vmatprep.subr.mxu0 0.0
    %585 = vmatpush2.msra.mxu0 0.0
    %586 = vmatprep.subr.mxu0 0.0
    %587 = vmatpush2.msra.mxu0 0.0
    %588 = vmatprep.subr.mxu0 0.0
    %589 = vmatpush2.msra.mxu0 0.0
    %590 = vmatprep.subr.mxu0 0.0
    %591 = vmatpush2.msra.mxu0 0.0
    %592 = vmatprep.subr.mxu0 0.0
    %593 = vmatpush2.msra.mxu0 0.0
    %594 = vmatprep.subr.mxu0 0.0
    %595 = vmatpush2.msra.mxu0 0.0
    %596 = vmatprep.subr.mxu0 0.0
    %597 = vmatpush2.msra.mxu0 0.0
    %598 = vmatprep.subr.mxu0 0.0
    %599 = vmatpush2.msra.mxu0 0.0
    %600 = vmatprep.subr.mxu0 0.0
    %601 = vmatpush2.msra.mxu0 0.0
    %602 = vmatprep.subr.mxu0 0.0
    %603 = vmatpush2.msra.mxu0 0.0
    %604 = vmatprep.subr.mxu0 0.0
    %605 = vmatpush2.msra.mxu0 0.0
    %606 = vmatprep.subr.mxu0 0.0
    %607 = vmatpush2.msra.mxu0 0.0
    %608 = vmatprep.subr.mxu0 0.0
    %609 = vmatpush2.msra.mxu0 0.0
    %610 = vmatprep.subr.mxu0 0.0
    %611 = vmatpush2.msra.mxu0 0.0
    %612 = vmatprep.subr.mxu0 0.0
    %613 = vmatpush2.msra.mxu0 0.0
    %614 = vmatprep.mubr.f32.mxu0 0.0
    %615 = vmatmul.mubr.f32.gmra.mxu0 %v548
    %v616 = vpop.f32.mrf.mxu0
    %v617 = vadd.f32 %v545, %v616
    %v618 = vpop.f32.mrf.mxu0
    %619 = vdwg.mxu0
    %v620 = vmax.f32 %v617, 0.0
    %v621 = vld [vmem:[%s13] sm:$0xff]
    %v622 = vld [vmem:[%s13 + $0x8] sm:$0xff]
    %v623 = vld [vmem:[%s13 + $0x10] sm:$0xff]
    %v624 = vld [vmem:[%s13 + $0x18] sm:$0xff]
    %v625 = vld [vmem:[%s14] sm:$0x1]
    %v627 = vlaneseq
    %v628 = vshrl.u32 %v627, 7
    %v629 = vsub.s32 0, %v628
    %v630 = vrot.slane %v625, %v629
    %v633 = vsel %vm369, %v620, 0
    %635 = vmatprep.subr.mxu0 0.0
    %636 = vmatpush1.msra.mxu0 0.0
    %637 = vmatprep.subr.mxu0 0.0
    %638 = vmatpush1.msra.mxu0 0.0
    %639 = vmatprep.subr.mxu0 0.0
    %640 = vmatpush1.msra.mxu0 0.0
    %641 = vmatprep.subr.mxu0 0.0
    %642 = vmatpush1.msra.mxu0 0.0
    %643 = vmatprep.subr.mxu0 0.0
    %644 = vmatpush1.msra.mxu0 0.0
    %645 = vmatprep.subr.mxu0 0.0
    %646 = vmatpush1.msra.mxu0 0.0
    %647 = vmatprep.subr.mxu0 0.0
    %648 = vmatpush1.msra.mxu0 0.0
    %649 = vmatprep.subr.mxu0 0.0
    %650 = vmatpush1.msra.mxu0 0.0
    %651 = vmatprep.subr.mxu0 0.0
    %652 = vmatpush1.msra.mxu0 0.0
    %653 = vmatprep.subr.mxu0 0.0
    %654 = vmatpush1.msra.mxu0 0.0
    %655 = vmatprep.subr.mxu0 0.0
    %656 = vmatpush1.msra.mxu0 0.0
    %657 = vmatprep.subr.mxu0 0.0
    %658 = vmatpush1.msra.mxu0 0.0
    %659 = vmatprep.subr.mxu0 0.0
    %660 = vmatpush1.msra.mxu0 %v624
    %661 = vmatprep.subr.mxu0 0.0
    %662 = vmatpush1.msra.mxu0 %v623
    %663 = vmatprep.subr.mxu0 0.0
    %664 = vmatpush1.msra.mxu0 %v622
    %665 = vmatprep.subr.mxu0 0.0
    %666 = vmatpush1.msra.mxu0 %v621
    %667 = vmatprep.subr.mxu0 0.0
    %668 = vmatpush2.msra.mxu0 0.0
    %669 = vmatprep.subr.mxu0 0.0
    %670 = vmatpush2.msra.mxu0 0.0
    %671 = vmatprep.subr.mxu0 0.0
    %672 = vmatpush2.msra.mxu0 0.0
    %673 = vmatprep.subr.mxu0 0.0
    %674 = vmatpush2.msra.mxu0 0.0
    %675 = vmatprep.subr.mxu0 0.0
    %676 = vmatpush2.msra.mxu0 0.0
    %677 = vmatprep.subr.mxu0 0.0
    %678 = vmatpush2.msra.mxu0 0.0
    %679 = vmatprep.subr.mxu0 0.0
    %680 = vmatpush2.msra.mxu0 0.0
    %681 = vmatprep.subr.mxu0 0.0
    %682 = vmatpush2.msra.mxu0 0.0
    %683 = vmatprep.subr.mxu0 0.0
    %684 = vmatpush2.msra.mxu0 0.0
    %685 = vmatprep.subr.mxu0 0.0
    %686 = vmatpush2.msra.mxu0 0.0
    %687 = vmatprep.subr.mxu0 0.0
    %688 = vmatpush2.msra.mxu0 0.0
    %689 = vmatprep.subr.mxu0 0.0
    %690 = vmatpush2.msra.mxu0 0.0
    %691 = vmatprep.subr.mxu0 0.0
    %692 = vmatpush2.msra.mxu0 0.0
    %693 = vmatprep.subr.mxu0 0.0
    %694 = vmatpush2.msra.mxu0 0.0
    %695 = vmatprep.subr.mxu0 0.0
    %696 = vmatpush2.msra.mxu0 0.0
    %697 = vmatprep.subr.mxu0 0.0
    %698 = vmatpush2.msra.mxu0 0.0
    %699 = vmatprep.mubr.f32.mxu0 0.0
    %700 = vmatmul.mubr.f32.gmra.mxu0 %v633
    %v701 = vpop.f32.mrf.mxu0
    %v702 = vadd.f32 %v630, %v701
    %v703 = vpop.f32.mrf.mxu0
    %704 = vdwg.mxu0
    %vm705 = vcmp.lt.s32.totalorder %v199, 16
    %v706 = vmul.f32 %v702, 1.442695
    %v707 = vpow.pop %v706
    %v708 = vsel %vm705, %v702, %v707
    %709 = vst.msk [vmem:[#allocation22] sm:$0xff] %vm369, %v708
    // Predicated region
    $region110: #{tpu_custom_call.1} parent=1 // pred_check
      _
    $region111: #{tpu_custom_call.1} parent=1 // pred_check_branch
      %711 = sbr.rel (0) target = $region113
    $region112: #{tpu_custom_call.1} parent=1 // pred_region
      %s713 = ssub.s32 128, 128
      %714 = vsyncadd [#allocation4], %s713
      %s716 = sshll.u32 [#allocation22], 4
      %s717 = int_to_ptr.vmem [resolvable:$true] %s716
      %719 = dma.vmem_to_hbm [thread:$0]  %s717, 128, %s15, [#allocation4]
    $region113: #{tpu_custom_call.1} parent=1 // pred_fallthru
      _
    // Predicated region
    $region114: #{tpu_custom_call.1} parent=1 // pred_check
      _
    $region115: #{tpu_custom_call.1} parent=1 // pred_check_branch
      %721 = sbr.rel (0) target = $region117
    $region116: #{tpu_custom_call.1} parent=1 // pred_region
      %722 = dma.done [#allocation4], 128
    $region117: #{tpu_custom_call.1} parent=1 // pred_fallthru
      _
    %723 = vsyncpa [#allocation3], 1
    %724 = vsyncpa [#allocation6], 1
    %725 = vsyncpa [#allocation9], 1
    %726 = vsyncpa [#allocation12], 1
    %727 = vsyncpa [#allocation15], 1
    %728 = vsyncpa [#allocation18], 1
    %729 = vsyncpa [#allocation21], 1
    %730 = vsyncpa [#allocation4], 1

</llo_original>
